<compile_context>
chip_gen: v6e
topology: v6e:2x2x1
jax: 0.10.0
libtpu: 0.0.40
codegen_flags: <defaults>
</compile_context>

<pallas_src>
import math

import numpy as np

import jax
import jax.numpy as jnp
from jax.experimental import pallas as pl
from jax.experimental.pallas import tpu as pltpu

SE_SIZE = math.pi / 2.0
COEFF = 0.05
# clamp(x - se_size/2, -pi/2, pi/2 - se_size/2) + se_size/2
#   == clamp(x, -pi/2 + se_size/2, pi/2)        (shift folded into the bounds)
CLIP_LO = -math.pi / 2.0 + SE_SIZE / 2.0        # == -pi/4
CLIP_HI = math.pi / 2.0

_TARGET_BLOCK_BYTES = 4 * 1024 * 1024   # 4 MiB per block -> 16 MiB of double buffers
_VMEM_LIMIT_BYTES = 32 * 1024 * 1024    # raise v5e's 16 MiB scoped default explicitly
_MIN_PALLAS_BYTES = 256 * 1024          # below this, fused XLA beats kernel dispatch
_LANES_CHOICES = (512, 256, 128)        # lane-dense widths for the 2-D path


def _round_up(n, m):
    return ((n + m - 1) // m) * m


def _sublane_packing(dtype):
    # sublane packing factor: f32 -> 8, bf16 -> 16, int8/fp8 -> 32
    return max(1, 32 // jnp.dtype(dtype).itemsize)


def _fit_sin_odd_coeffs():
    """Degree-9 fitted odd polynomial for sin on [-pi/2, pi/2].

    Least-squares fit in float64 on a dense grid (near-minimax; max abs error
    ~1e-8, far below the f32 math around it).  The post-clamp domain
    [-pi/4, pi/2] is a subset of the fit interval.
    """
    hi = np.pi / 2.0
    x = np.linspace(0.0, hi, 4001, dtype=np.float64)[1:]
    basis = np.stack([x ** 3, x ** 5, x ** 7, x ** 9], axis=1)
    target = np.sin(x) - x
    coeffs, _, _, _ = np.linalg.lstsq(basis, target, rcond=None)
    return tuple(float(c) for c in coeffs)


_C3, _C5, _C7, _C9 = _fit_sin_odd_coeffs()


def _bounded_sin(c):
    """sin(c) for c already clamped to [-pi/4, pi/2] (f32, degree-9 odd poly)."""
    c2 = c * c
    p = _C9
    p = p * c2 + _C7
    p = p * c2 + _C5
    p = p * c2 + _C3
    return c + (c * c2) * p


def _sloped_dilated_sin_kernel(x_ref, o_ref):
    # f32 internal math regardless of I/O dtype (v5e has no bf16 VPU/EUP path);
    # HBM traffic stays in the input dtype.
    x = x_ref[...].astype(jnp.float32)
    # The clamp MUST precede the polynomial: on masked edge blocks the OOB
    # lanes hold unspecified data and the clamp is what bounds them.
    c = jnp.clip(x, CLIP_LO, CLIP_HI)
    o_ref[...] = (_bounded_sin(c) + COEFF * x).astype(o_ref.dtype)


def _compiler_params():
    return pltpu.CompilerParams(
        dimension_semantics=("parallel",),
        vmem_limit_bytes=_VMEM_LIMIT_BYTES,
    )


def _cost_estimate(total, itemsize):
    return pl.CostEstimate(flops=16 * total, transcendentals=0,
                           bytes_accessed=2 * total * itemsize)


def _pick_block(extent, max_block, align):
    """Block size along the gridded axis: <= max_block, aligned, and split into
    >= ~4 grid steps for small/medium inputs (feeds both v7x TCs + pipeline)."""
    if extent <= max_block:
        quarter = _round_up(pl.cdiv(extent, 4), align)
        return quarter if quarter < extent else extent   # == extent: full dim, legal
    return max_block


def _pallas_2d(x2d, out_dtype):
    """Lane-dense (rows, lanes) path, no padding; edge rows (if any) masked."""
    rows, lanes = x2d.shape
    itemsize = jnp.dtype(out_dtype).itemsize
    packing = _sublane_packing(out_dtype)
    max_rows = max(packing,
                   (_TARGET_BLOCK_BYTES // (lanes * itemsize)) // packing * packing)
    block_r = _pick_block(rows, max_rows, packing)
    grid = (pl.cdiv(rows, block_r),)
    return pl.pallas_call(
        _sloped_dilated_sin_kernel,
        out_shape=jax.ShapeDtypeStruct((rows, lanes), out_dtype),
        grid=grid,
        in_specs=[pl.BlockSpec((block_r, lanes), lambda i: (i, 0))],
        out_specs=pl.BlockSpec((block_r, lanes), lambda i: (i, 0)),
        compiler_params=_compiler_params(),
        cost_estimate=_cost_estimate(rows * lanes, itemsize),
    )(x2d)


def _pallas_1d(flat, out_dtype):
    """Flat 1-D path for sizes not divisible by 128: partial edge block is
    masked by Pallas (no jnp.pad, no trailing slice -> no extra HBM passes)."""
    (total,) = flat.shape
    itemsize = jnp.dtype(out_dtype).itemsize
    packing = _sublane_packing(out_dtype)
    unit = 8 * 128 * packing  # multiple of the (sublane, lane) tiling footprint
    max_block = max(unit, (_TARGET_BLOCK_BYTES // itemsize) // unit * unit)
    block = _pick_block(total, max_block, unit)
    grid = (pl.cdiv(total, block),)
    return pl.pallas_call(
        _sloped_dilated_sin_kernel,
        out_shape=jax.ShapeDtypeStruct((total,), out_dtype),
        grid=grid,
        in_specs=[pl.BlockSpec((block,), lambda i: (i,))],
        out_specs=pl.BlockSpec((block,), lambda i: (i,)),
        compiler_params=_compiler_params(),
        cost_estimate=_cost_estimate(total, itemsize),
    )(flat)


def _pallas_padded_2d(flat, out_dtype):
    """Safety net only (old pad -> dense 2-D -> slice route, two extra HBM
    passes).  Taken only if the masked 1-D path fails to lower on the
    installed jax/Mosaic version; semantics are identical."""
    (total,) = flat.shape
    lanes = 512
    packing = _sublane_packing(out_dtype)
    rows = _round_up(pl.cdiv(total, lanes), packing)
    padded = jnp.pad(flat, (0, rows * lanes - total))
    out = _pallas_2d(padded.reshape(rows, lanes), out_dtype)
    return out.reshape(-1)[:total]


def _sloped_dilated_sin_pallas(x):
    orig_shape = x.shape
    dtype = x.dtype
    total = x.size

    lanes = next((l for l in _LANES_CHOICES if total % l == 0), None)
    if lanes is not None:
        # Exactly divisible -> lane-dense 2-D path (no pad, no slice).
        out2d = _pallas_2d(x.reshape(total // lanes, lanes), dtype)
        return out2d.reshape(orig_shape)

    flat = x.reshape(-1)
    try:
        out = _pallas_1d(flat, dtype)
    except Exception:  # safety net; not expected to trigger
        out = _pallas_padded_2d(flat, dtype)
    return out.reshape(orig_shape)


def _sloped_dilated_sin_xla(x):
    """Fused-XLA path for tiny inputs, where kernel dispatch would dominate."""
    xf = x.astype(jnp.float32)
    return (jnp.sin(jnp.clip(xf, CLIP_LO, CLIP_HI)) + COEFF * xf).astype(x.dtype)


def sloped_dilated_sin(x, *, force_pallas=False,
                       min_pallas_bytes=_MIN_PALLAS_BYTES):
    """Forward pass of the PyTorch SlopedDilatedSin module (any shape/dtype)."""
    if (not force_pallas
            and x.size * jnp.dtype(x.dtype).itemsize < min_pallas_bytes):
        return _sloped_dilated_sin_xla(x)
    return _sloped_dilated_sin_pallas(x)


def _reference(x):
    # Literal transcription of the PyTorch forward (unfolded form), in f32.
    half = SE_SIZE / 2.0
    shifted = x - half
    clamped = jnp.clip(shifted, -math.pi / 2.0, math.pi / 2.0 - half)
    return jnp.sin(clamped + half) + x * COEFF


if __name__ == "__main__":
    key = jax.random.PRNGKey(0)
    k0, k1, k2 = jax.random.split(key, 3)

    # 1) Module-scale NCHW input; force the Pallas path (the default wrapper
    #    would route something this tiny to the fused-XLA fallback).
    x = jax.random.normal(k0, (2, 4, 16, 16), dtype=jnp.float32) * 2.0
    out = jax.block_until_ready(sloped_dilated_sin(x, force_pallas=True))
    ref = _reference(x)
    assert out.shape == x.shape and out.dtype == x.dtype
    assert jnp.allclose(out, ref, atol=2e-6, rtol=2e-6), "mismatch (small)"

    # Default wrapper on the tiny input takes the fused-XLA fallback path.
    out_fb = jax.block_until_ready(sloped_dilated_sin(x))
    assert jnp.allclose(out_fb, ref, atol=2e-6, rtol=2e-6), "mismatch (fallback)"

    # 2) Odd total (not divisible by 128): exercises the flat 1-D path with a
    #    Pallas-masked partial edge block and a multi-step parallel grid --
    #    no pad / no slice copies.
    y = jax.random.normal(k1, (3, 5, 137, 139), dtype=jnp.float32) * 3.0
    out_y = jax.block_until_ready(sloped_dilated_sin(y))
    assert out_y.shape == y.shape and out_y.dtype == y.dtype
    assert jnp.allclose(out_y, _reference(y), atol=2e-6, rtol=2e-6), \
        "mismatch (1-D masked path)"

    # 3) bf16 I/O (half the HBM bytes; dtype-dependent sublane packing = 16):
    #    divisible size -> lane-dense 2-D path with a 4-step grid.
    z = jax.random.normal(k2, (4, 8, 64, 128), dtype=jnp.bfloat16) * 2.0
    out_z = jax.block_until_ready(sloped_dilated_sin(z))
    assert out_z.shape == z.shape and out_z.dtype == jnp.bfloat16
    ref_z = _reference(z.astype(jnp.float32))
    assert jnp.allclose(out_z.astype(jnp.float32), ref_z, atol=1e-2, rtol=1e-2), \
        "mismatch (bf16 path)"

    print("KERNEL_OK")
</pallas_src>

<mosaic_0001>
module attributes {stable_mosaic.version = 11 : i64} {
  func.func @_sloped_dilated_sin_kernel(%arg0: i32, %arg1: memref<4x512xf32, #tpu.memory_space<vmem>>, %arg2: memref<4x512xf32, #tpu.memory_space<vmem>>) attributes {dimension_semantics = [#tpu.dimension_semantics<parallel>], iteration_bounds = array<i64: 1>, scalar_prefetch = 0 : i64, scratch_operands = 0 : i64, tpu.core_type = #tpu.core_type<tc>, window_params = [{transform_indices = @transform_0, window_bounds = array<i64: 4, 512>}, {transform_indices = @transform_1, window_bounds = array<i64: 4, 512>}]} {
    %c0 = arith.constant 0 : index
    %c0_0 = arith.constant 0 : index
    %0 = vector.load %arg1[%c0, %c0_0] : memref<4x512xf32, #tpu.memory_space<vmem>>, vector<4x512xf32>
    %cst = arith.constant -0.785398185 : f32
    %cst_1 = arith.constant 1.57079637 : f32
    %1 = vector.broadcast %cst : f32 to vector<4x512xf32>
    %2 = arith.maximumf %1, %0 : vector<4x512xf32>
    %3 = vector.broadcast %cst_1 : f32 to vector<4x512xf32>
    %4 = arith.minimumf %3, %2 : vector<4x512xf32>
    %5 = arith.mulf %4, %4 : vector<4x512xf32>
    %cst_2 = arith.constant 2.60651814E-6 : f32
    %6 = vector.broadcast %cst_2 : f32 to vector<4x512xf32>
    %7 = arith.mulf %6, %5 : vector<4x512xf32>
    %cst_3 = arith.constant -1.98095644E-4 : f32
    %8 = vector.broadcast %cst_3 : f32 to vector<4x512xf32>
    %9 = arith.addf %7, %8 : vector<4x512xf32>
    %10 = arith.mulf %9, %5 : vector<4x512xf32>
    %cst_4 = arith.constant 0.0083330581 : f32
    %11 = vector.broadcast %cst_4 : f32 to vector<4x512xf32>
    %12 = arith.addf %10, %11 : vector<4x512xf32>
    %13 = arith.mulf %12, %5 : vector<4x512xf32>
    %cst_5 = arith.constant -0.166666582 : f32
    %14 = vector.broadcast %cst_5 : f32 to vector<4x512xf32>
    %15 = arith.addf %13, %14 : vector<4x512xf32>
    %16 = arith.mulf %4, %5 : vector<4x512xf32>
    %17 = arith.mulf %16, %15 : vector<4x512xf32>
    %18 = arith.addf %4, %17 : vector<4x512xf32>
    %cst_6 = arith.constant 5.000000e-02 : f32
    %19 = vector.broadcast %cst_6 : f32 to vector<4x512xf32>
    %20 = arith.mulf %19, %0 : vector<4x512xf32>
    %21 = arith.addf %18, %20 : vector<4x512xf32>
    %c0_7 = arith.constant 0 : index
    %c0_8 = arith.constant 0 : index
    %22 = vector.load %arg2[%c0_7, %c0_8] : memref<4x512xf32, #tpu.memory_space<vmem>>, vector<4x512xf32>
    tpu.vector_store %arg2[%c0_7, %c0_8], %21 {strides = array<i32>} : memref<4x512xf32, #tpu.memory_space<vmem>>, vector<4x512xf32>,
    return
  }
  func.func @transform_0(%arg0: i32) -> (i32, i32) {
    %c0_i32 = arith.constant 0 : i32
    %c0_i32_0 = arith.constant 0 : i32
    return %arg0, %c0_i32 : i32, i32
  }
  func.func @transform_1(%arg0: i32) -> (i32, i32) {
    %c0_i32 = arith.constant 0 : i32
    %c0_i32_0 = arith.constant 0 : i32
    return %arg0, %c0_i32 : i32, i32
  }
}

</mosaic_0001>

<llo_original>
// kernel: tpu_custom_call.1
$region0: #{tpu_custom_call.1}
  #allocation0 [shape = 'u32[]', space=smem, size = 0x4, offset = 0x4, fixed_abs, tag = 'smem constant byte address 0x4 - core index']
  #allocation1 [shape = 'u32[144,128]{1,0:T(1,128)}', space=vmem, size = 0x12000, scoped, tag = 'internal scratch']
  %s0 = inlined_call_operand.hbm [shape: f32[4,512], index: 0, kind: input, shape index: {}]
  %s1 = inlined_call_operand.hbm [shape: f32[4,512], index: 1, kind: output, shape index: {}]
  %s2 = sld [smem:[#allocation0]]
  $region18: #{tpu_custom_call.1} parent=0
    _
  %s4 = ssub.s32 1, %s2
  %s5 = scalar_select 0, %s4, %s2
  $region1: #{tpu_custom_call.1} parent=0
    #allocation2 [shape = 'u8[8192]{0}', space=vmem, size = 0x2000, scoped, tag = 'input window, operand 0, single buffered']
    #allocation3 [shape = 's32[1]{0}', space=sflag, size = 0x4, scoped, tag = 'scoped memory for tpu_custom_call.1']
    #allocation4 [shape = 's32[1]{0}', space=sflag, size = 0x4, scoped, tag = 'scoped memory for tpu_custom_call.1']
    #allocation5 [shape = 'u8[8192]{0}', space=vmem, size = 0x2000, scoped, tag = 'output window, operand 0, single buffered']
    %6 = vsyncpa [#allocation3], 0
    %7 = vsyncpa [#allocation4], 0
    // Predicated region
    $region2: #{tpu_custom_call.1} parent=1 // pred_check
      _
    $region3: #{tpu_custom_call.1} parent=1 // pred_check_branch
      %9 = sbr.rel (0) target = $region5
    $region4: #{tpu_custom_call.1} parent=1 // pred_region
      %s11 = ssub.s32 256, 256
      %12 = vsyncadd [#allocation3], %s11
      %s14 = sshll.u32 [#allocation2], 4
      %s15 = int_to_ptr.vmem [resolvable:$true] %s14
      %17 = dma.hbm_to_vmem [thread:$0]  %s0, 256, %s15, [#allocation3]
    $region5: #{tpu_custom_call.1} parent=1 // pred_fallthru
      _
    // Predicated region
    $region6: #{tpu_custom_call.1} parent=1 // pred_check
      _
    $region7: #{tpu_custom_call.1} parent=1 // pred_check_branch
      %19 = sbr.rel (0) target = $region9
    $region8: #{tpu_custom_call.1} parent=1 // pred_region
      %20 = dma.done [#allocation3], 256
    $region9: #{tpu_custom_call.1} parent=1 // pred_fallthru
      _
    %v21 = vld [vmem:[#allocation2] sm:$0xff]
    %v22 = vld [vmem:[#allocation2 + $0x8] sm:$0xff]
    %v23 = vmax.f32 %v21, -0.7853982
    %v24 = vmax.f32 %v22, -0.7853982
    %v25 = vmin.f32 %v23, 1.5707964
    %v26 = vmin.f32 %v24, 1.5707964
    %v27 = vmul.f32 %v25, %v25
    %v28 = vmul.f32 %v26, %v26
    %v29 = vmul.f32 %v27, 2.6065181e-06
    %v30 = vmul.f32 %v28, 2.6065181e-06
    %v31 = vadd.f32 %v29, -0.00019809564
    %v32 = vadd.f32 %v30, -0.00019809564
    %v33 = vmul.f32 %v31, %v27
    %v34 = vmul.f32 %v32, %v28
    %v35 = vadd.f32 %v33, 0.008333058
    %v36 = vadd.f32 %v34, 0.008333058
    %v37 = vmul.f32 %v35, %v27
    %v38 = vmul.f32 %v36, %v28
    %v39 = vadd.f32 %v37, -0.16666658
    %v40 = vadd.f32 %v38, -0.16666658
    %v41 = vmul.f32 %v25, %v27
    %v42 = vmul.f32 %v26, %v28
    %v43 = vmul.f32 %v41, %v39
    %v44 = vmul.f32 %v42, %v40
    %v45 = vadd.f32 %v25, %v43
    %v46 = vadd.f32 %v26, %v44
    %v47 = vmul.f32 %v21, 0.05
    %v48 = vmul.f32 %v22, 0.05
    %v49 = vadd.f32 %v45, %v47
    %v50 = vadd.f32 %v46, %v48
    %51 = vst [vmem:[#allocation5] sm:$0xff] %v49
    %52 = vst [vmem:[#allocation5 + $0x8] sm:$0xff] %v50
    // Predicated region
    $region10: #{tpu_custom_call.1} parent=1 // pred_check
      _
    $region11: #{tpu_custom_call.1} parent=1 // pred_check_branch
      %54 = sbr.rel (0) target = $region13
    $region12: #{tpu_custom_call.1} parent=1 // pred_region
      %s56 = ssub.s32 256, 256
      %57 = vsyncadd [#allocation4], %s56
      %s59 = sshll.u32 [#allocation5], 4
      %s60 = int_to_ptr.vmem [resolvable:$true] %s59
      %62 = dma.vmem_to_hbm [thread:$0]  %s60, 256, %s1, [#allocation4]
    $region13: #{tpu_custom_call.1} parent=1 // pred_fallthru
      _
    // Predicated region
    $region14: #{tpu_custom_call.1} parent=1 // pred_check
      _
    $region15: #{tpu_custom_call.1} parent=1 // pred_check_branch
      %64 = sbr.rel (0) target = $region17
    $region16: #{tpu_custom_call.1} parent=1 // pred_region
      %65 = dma.done [#allocation4], 256
    $region17: #{tpu_custom_call.1} parent=1 // pred_fallthru
      _
    %66 = vsyncpa [#allocation3], 1
    %67 = vsyncpa [#allocation4], 1

</llo_original>
